<compile_context>
chip_gen: v7x
topology: tpu7x:2x2x1
jax: 0.10.0
libtpu: 0.0.40
codegen_flags: <defaults>
</compile_context>

<pallas_src>
import jax
import jax.numpy as jnp
from jax import lax
from jax.experimental import pallas as pl
from jax.experimental.pallas import tpu as pltpu

_EPS = 1e-12            # torch F.normalize default eps
_EPS_SQ = _EPS * _EPS   # 1/max(||x||,eps) == rsqrt(max(||x||^2, eps^2))
_NEG_LARGE = -1e30      # effectively -inf for masked (padded) negative columns


def _round_up(x: int, m: int) -> int:
    return (x + m - 1) // m * m


def _make_infonce_kernel(inv_t: float, mask_cols: bool):
    def kernel(q_ref, p_ref, g_ref, gs_ref, bias_ref, o_ref,
               q_sc, m_sc, l_sc, pos_sc):
        k = pl.program_id(1)

        @pl.when(k == 0)
        def _init():
            q = q_ref[...].astype(jnp.float32)                 # (tq, Dp)
            p = p_ref[...].astype(jnp.float32)                 # (tq, Dp)
            # rsqrt normalization (EUP); fold 1/T into the query scale so the
            # logits come out of the MXU already temperature-scaled.
            q_scale = lax.rsqrt(
                jnp.maximum(jnp.sum(q * q, axis=1, keepdims=True), _EPS_SQ)) * inv_t
            p_scale = lax.rsqrt(
                jnp.maximum(jnp.sum(p * p, axis=1, keepdims=True), _EPS_SQ))
            qs = q * q_scale                                   # (tq, Dp), carries 1/T
            q_sc[...] = qs                                     # hoisted across neg tiles
            pos = jnp.sum(qs * (p * p_scale), axis=1, keepdims=True)   # (tq, 1)
            pos_sc[...] = pos
            # online logsumexp state: seed with the positive logit itself.
            m_sc[...] = pos
            l_sc[...] = jnp.ones_like(pos)

        # Negative tile: inverse norms were precomputed in the wrapper; only a
        # single lane-broadcast multiply remains before the MXU push.
        g = g_ref[...].astype(jnp.float32) * gs_ref[...]        # (tn, Dp)
        logits = lax.dot_general(                               # (tq, tn), f32 accumulate
            q_sc[...], g,
            dimension_numbers=(((1,), (1,)), ((), ())),
            preferred_element_type=jnp.float32,
        )

        if mask_cols:
            # Precomputed additive bias row: 0 for real columns, -1e30 for
            # padded columns (only the last k tile actually has any).
            logits = logits + bias_ref[...]                     # (1, tn) broadcast

        m_prev = m_sc[...]
        m_new = jnp.maximum(m_prev, jnp.max(logits, axis=1, keepdims=True))
        alpha = jnp.exp(m_prev - m_new)
        l_sc[...] = alpha * l_sc[...] + jnp.sum(jnp.exp(logits - m_new),
                                                axis=1, keepdims=True)
        m_sc[...] = m_new

        @pl.when(k == pl.num_programs(1) - 1)
        def _finalize():
            # per-row loss = logsumexp([pos, neg_row]) - pos
            o_ref[...] = m_sc[...] + jnp.log(l_sc[...]) - pos_sc[...]

    return kernel


def infonce_loss_pallas(query_embeds, pos_embeds, neg_embeds,
                        temperature: float = 0.1, *, tq=None, tn=None):
    """Pallas implementation of InfoNCELoss.forward. Returns scalar f32 loss."""
    n, d = query_embeds.shape
    n_neg = neg_embeds.shape[0]

    d_pad = _round_up(d, 128)                       # lane-dense hidden dim

    if tq is None:
        tq = min(_round_up(n, 8), 256)              # query-row tile (sublane aligned)
        if n > 8:
            # Megacore (v7x): keep >= 2 query-row tiles so the "parallel"
            # axis can be sharded across both TensorCores.
            tq = min(tq, _round_up((n + 1) // 2, 8))
    n_pad = _round_up(n, tq)

    g_itemsize = jnp.dtype(neg_embeds.dtype).itemsize
    if tn is None:
        # Target ~2 MiB per negative-tile buffer (double-buffered -> ~4 MiB),
        # multiple of 256 for the v6e/v7x MXU, capped at 2048.
        cap = (2 * 1024 * 1024) // max(d_pad * g_itemsize, 1)
        cap = max(256, min(2048, (cap // 256) * 256))
        tn = min(_round_up(n_neg, 128), cap)
    n_neg_pad = _round_up(n_neg, tn)
    mask_cols = n_neg_pad != n_neg

    # Pad in the caller's NATIVE dtype (no upcast) -> halves HBM traffic for
    # bf16 inputs; all math is promoted to f32 inside the kernel.
    qp = jnp.pad(query_embeds, ((0, n_pad - n), (0, d_pad - d)))
    pp = jnp.pad(pos_embeds, ((0, n_pad - n), (0, d_pad - d)))
    gp = jnp.pad(neg_embeds, ((0, n_neg_pad - n_neg), (0, d_pad - d)))

    # Precompute negative-row inverse norms ONCE (tiny (N_neg, 1) vector in f32).
    g32 = neg_embeds.astype(jnp.float32)
    gscale = lax.rsqrt(
        jnp.maximum(jnp.sum(g32 * g32, axis=1, keepdims=True), _EPS_SQ))
    gscale = jnp.pad(gscale, ((0, n_neg_pad - n_neg), (0, 0)))   # pad rows -> 0

    # Precomputed padded-column bias row (0 real / -1e30 padded).
    col = jnp.arange(n_neg_pad)
    bias = jnp.where(col < n_neg, 0.0, _NEG_LARGE).astype(jnp.float32)[None, :]

    grid = (n_pad // tq, n_neg_pad // tn)
    kernel = _make_infonce_kernel(1.0 / float(temperature), mask_cols)

    # VMEM budget from the actual tile footprint (double-buffered pipeline
    # blocks + scratch), capped at 48 MiB to stay safe on v7x (64 MiB VMEM).
    q_itemsize = jnp.dtype(query_embeds.dtype).itemsize
    p_itemsize = jnp.dtype(pos_embeds.dtype).itemsize
    est = 2 * (tq * d_pad * q_itemsize + tq * d_pad * p_itemsize
               + tn * d_pad * g_itemsize + tn * 4 + tn * 4 + tq * 4)
    est += tq * d_pad * 4 + 3 * tq * 4
    vmem_limit = int(min(max(2 * est, 32 * 1024 * 1024), 48 * 1024 * 1024))

    per_row = pl.pallas_call(
        kernel,
        out_shape=jax.ShapeDtypeStruct((n_pad, 1), jnp.float32),
        grid_spec=pltpu.PrefetchScalarGridSpec(
            num_scalar_prefetch=0,
            grid=grid,
            in_specs=[
                pl.BlockSpec((tq, d_pad), lambda i, k: (i, 0)),   # query tile
                pl.BlockSpec((tq, d_pad), lambda i, k: (i, 0)),   # positive tile
                pl.BlockSpec((tn, d_pad), lambda i, k: (k, 0)),   # negative tile
                pl.BlockSpec((tn, 1), lambda i, k: (k, 0)),       # neg inverse norms
                pl.BlockSpec((1, tn), lambda i, k: (0, k)),       # pad-column bias
            ],
            out_specs=pl.BlockSpec((tq, 1), lambda i, k: (i, 0)),
            scratch_shapes=[
                pltpu.VMEM((tq, d_pad), jnp.float32),   # cached normalized/scaled q
                pltpu.VMEM((tq, 1), jnp.float32),       # running max m
                pltpu.VMEM((tq, 1), jnp.float32),       # running sum-exp l
                pltpu.VMEM((tq, 1), jnp.float32),       # positive logit
            ],
        ),
        compiler_params=pltpu.CompilerParams(
            dimension_semantics=("parallel", "arbitrary"),
            vmem_limit_bytes=vmem_limit,
        ),
    )(qp, pp, gp, gscale, bias)

    # Drop padded query rows; mean reduction over real rows (tiny XLA epilogue).
    return jnp.mean(per_row[:n, 0])


def infonce_loss_ref(query_embeds, pos_embeds, neg_embeds, temperature: float = 0.1):
    """Pure-JAX reference (mirrors the PyTorch module)."""
    def norm(x):
        return x / jnp.maximum(jnp.linalg.norm(x, axis=1, keepdims=True), _EPS)

    qn, pn, gn = norm(query_embeds), norm(pos_embeds), norm(neg_embeds)
    pos_sim = jnp.diag(qn @ pn.T) / temperature
    neg_sim = (qn @ gn.T) / temperature
    logits = jnp.concatenate([pos_sim[:, None], neg_sim], axis=1)
    log_probs = jax.nn.log_softmax(logits, axis=1)
    return -jnp.mean(log_probs[:, 0])


if __name__ == "__main__":
    TEMPERATURE = 0.1
    key = jax.random.PRNGKey(0)

    # Case 1: small shapes from the module spec (single grid step, padded cols).
    N, D, N_NEG = 8, 32, 16
    kq, kp, kn, key = jax.random.split(key, 4)
    q1 = jax.random.normal(kq, (N, D), dtype=jnp.float32)
    p1 = jax.random.normal(kp, (N, D), dtype=jnp.float32)
    g1 = jax.random.normal(kn, (N_NEG, D), dtype=jnp.float32)

    loss1 = jax.block_until_ready(infonce_loss_pallas(q1, p1, g1, TEMPERATURE))
    ref1 = infonce_loss_ref(q1, p1, g1, TEMPERATURE)
    assert jnp.allclose(loss1, ref1, atol=1e-4, rtol=1e-4), (loss1, ref1)

    # Case 2: ragged shapes exercising the multi-tile grid, padded query rows,
    # padded negative columns, and the online logsumexp across neg tiles.
    N2, D2, N_NEG2 = 20, 48, 300
    kq, kp, kn, key = jax.random.split(key, 4)
    q2 = jax.random.normal(kq, (N2, D2), dtype=jnp.float32)
    p2 = jax.random.normal(kp, (N2, D2), dtype=jnp.float32)
    g2 = jax.random.normal(kn, (N_NEG2, D2), dtype=jnp.float32)

    loss2 = jax.block_until_ready(
        infonce_loss_pallas(q2, p2, g2, TEMPERATURE, tq=8, tn=128))
    ref2 = infonce_loss_ref(q2, p2, g2, TEMPERATURE)
    assert jnp.allclose(loss2, ref2, atol=1e-4, rtol=1e-4), (loss2, ref2)

    # Case 3: default tile selection (>= 2 query tiles for megacore, large tn,
    # padded negative columns with the precomputed bias row).
    N3, D3, N_NEG3 = 96, 64, 1000
    kq, kp, kn, key = jax.random.split(key, 4)
    q3 = jax.random.normal(kq, (N3, D3), dtype=jnp.float32)
    p3 = jax.random.normal(kp, (N3, D3), dtype=jnp.float32)
    g3 = jax.random.normal(kn, (N_NEG3, D3), dtype=jnp.float32)

    loss3 = jax.block_until_ready(infonce_loss_pallas(q3, p3, g3, TEMPERATURE))
    ref3 = infonce_loss_ref(q3, p3, g3, TEMPERATURE)
    assert jnp.allclose(loss3, ref3, atol=1e-4, rtol=1e-4), (loss3, ref3)

    print("KERNEL_OK")
</pallas_src>

<mosaic_0001>
module attributes {stable_mosaic.version = 11 : i64} {
  func.func @kernel(%arg0: i32, %arg1: i32, %arg2: memref<8x128xf32, #tpu.memory_space<vmem>>, %arg3: memref<8x128xf32, #tpu.memory_space<vmem>>, %arg4: memref<128x128xf32, #tpu.memory_space<vmem>>, %arg5: memref<128x1xf32, #tpu.memory_space<vmem>>, %arg6: memref<1x128xf32, #tpu.memory_space<vmem>>, %arg7: memref<8x1xf32, #tpu.memory_space<vmem>>, %arg8: memref<8x128xf32, #tpu.memory_space<vmem>>, %arg9: memref<8x1xf32, #tpu.memory_space<vmem>>, %arg10: memref<8x1xf32, #tpu.memory_space<vmem>>, %arg11: memref<8x1xf32, #tpu.memory_space<vmem>>) attributes {dimension_semantics = [#tpu.dimension_semantics<parallel>, #tpu.dimension_semantics<arbitrary>], iteration_bounds = array<i64: 1, 1>, scalar_prefetch = 0 : i64, scratch_operands = 4 : i64, tpu.core_type = #tpu.core_type<tc>, window_params = [{transform_indices = @transform_0, window_bounds = array<i64: 8, 128>}, {transform_indices = @transform_1, window_bounds = array<i64: 8, 128>}, {transform_indices = @transform_2, window_bounds = array<i64: 128, 128>}, {transform_indices = @transform_3, window_bounds = array<i64: 128, 1>}, {transform_indices = @transform_4, window_bounds = array<i64: 1, 128>}, {transform_indices = @transform_5, window_bounds = array<i64: 8, 1>}]} {
    %c0_i32 = arith.constant 0 : i32
    %0 = arith.cmpi eq, %arg1, %c0_i32 : i32
    %1 = arith.extui %0 : i1 to i32
    %c0_i32_0 = arith.constant 0 : i32
    %2 = arith.cmpi ne, %1, %c0_i32_0 : i32
    scf.if %2 {
      %c0_20 = arith.constant 0 : index
      %c0_21 = arith.constant 0 : index
      %31 = vector.load %arg2[%c0_20, %c0_21] : memref<8x128xf32, #tpu.memory_space<vmem>>, vector<8x128xf32>
      %c0_22 = arith.constant 0 : index
      %c0_23 = arith.constant 0 : index
      %32 = vector.load %arg3[%c0_22, %c0_23] : memref<8x128xf32, #tpu.memory_space<vmem>>, vector<8x128xf32>
      %33 = arith.mulf %31, %31 : vector<8x128xf32>
      %cst_24 = arith.constant dense<0.000000e+00> : vector<8xf32>
      %34 = vector.multi_reduction <add>, %33, %cst_24 [1] : vector<8x128xf32> to vector<8xf32>
      %35 = vector.shape_cast %34 : vector<8xf32> to vector<8x1xf32>
      %cst_25 = arith.constant 1.000000e-24 : f32
      %36 = vector.broadcast %cst_25 : f32 to vector<8x1xf32>
      %37 = arith.maximumf %35, %36 : vector<8x1xf32>
      %38 = math.rsqrt %37 : vector<8x1xf32>
      %cst_26 = arith.constant 1.000000e+01 : f32
      %39 = vector.broadcast %cst_26 : f32 to vector<8x1xf32>
      %40 = arith.mulf %38, %39 : vector<8x1xf32>
      %41 = arith.mulf %32, %32 : vector<8x128xf32>
      %cst_27 = arith.constant dense<0.000000e+00> : vector<8xf32>
      %42 = vector.multi_reduction <add>, %41, %cst_27 [1] : vector<8x128xf32> to vector<8xf32>
      %43 = vector.shape_cast %42 : vector<8xf32> to vector<8x1xf32>
      %cst_28 = arith.constant 1.000000e-24 : f32
      %44 = vector.broadcast %cst_28 : f32 to vector<8x1xf32>
      %45 = arith.maximumf %43, %44 : vector<8x1xf32>
      %46 = math.rsqrt %45 : vector<8x1xf32>
      %47 = vector.broadcast %40 : vector<8x1xf32> to vector<8x128xf32>
      %48 = arith.mulf %31, %47 : vector<8x128xf32>
      %c0_29 = arith.constant 0 : index
      %c0_30 = arith.constant 0 : index
      %49 = vector.load %arg8[%c0_29, %c0_30] : memref<8x128xf32, #tpu.memory_space<vmem>>, vector<8x128xf32>
      tpu.vector_store %arg8[%c0_29, %c0_30], %48 {strides = array<i32>} : memref<8x128xf32, #tpu.memory_space<vmem>>, vector<8x128xf32>,
      %50 = vector.broadcast %46 : vector<8x1xf32> to vector<8x128xf32>
      %51 = arith.mulf %32, %50 : vector<8x128xf32>
      %52 = arith.mulf %48, %51 : vector<8x128xf32>
      %cst_31 = arith.constant dense<0.000000e+00> : vector<8xf32>
      %53 = vector.multi_reduction <add>, %52, %cst_31 [1] : vector<8x128xf32> to vector<8xf32>
      %54 = vector.shape_cast %53 : vector<8xf32> to vector<8x1xf32>
      %c0_32 = arith.constant 0 : index
      %c0_33 = arith.constant 0 : index
      %55 = vector.load %arg11[%c0_32, %c0_33] : memref<8x1xf32, #tpu.memory_space<vmem>>, vector<8x1xf32>
      tpu.vector_store %arg11[%c0_32, %c0_33], %54 {strides = array<i32>} : memref<8x1xf32, #tpu.memory_space<vmem>>, vector<8x1xf32>,
      %c0_34 = arith.constant 0 : index
      %c0_35 = arith.constant 0 : index
      %56 = vector.load %arg9[%c0_34, %c0_35] : memref<8x1xf32, #tpu.memory_space<vmem>>, vector<8x1xf32>
      tpu.vector_store %arg9[%c0_34, %c0_35], %54 {strides = array<i32>} : memref<8x1xf32, #tpu.memory_space<vmem>>, vector<8x1xf32>,
      %cst_36 = arith.constant 1.000000e+00 : f32
      %57 = vector.broadcast %cst_36 : f32 to vector<8x1xf32>
      %c0_37 = arith.constant 0 : index
      %c0_38 = arith.constant 0 : index
      %58 = vector.load %arg10[%c0_37, %c0_38] : memref<8x1xf32, #tpu.memory_space<vmem>>, vector<8x1xf32>
      tpu.vector_store %arg10[%c0_37, %c0_38], %57 {strides = array<i32>} : memref<8x1xf32, #tpu.memory_space<vmem>>, vector<8x1xf32>,
    } else {
    }
    %c0 = arith.constant 0 : index
    %c0_1 = arith.constant 0 : index
    %3 = vector.load %arg4[%c0, %c0_1] : memref<128x128xf32, #tpu.memory_space<vmem>>, vector<128x128xf32>
    %c0_2 = arith.constant 0 : index
    %c0_3 = arith.constant 0 : index
    %4 = vector.load %arg5[%c0_2, %c0_3] : memref<128x1xf32, #tpu.memory_space<vmem>>, vector<128x1xf32>
    %5 = vector.broadcast %4 : vector<128x1xf32> to vector<128x128xf32>
    %6 = arith.mulf %3, %5 : vector<128x128xf32>
    %c0_4 = arith.constant 0 : index
    %c0_5 = arith.constant 0 : index
    %7 = vector.load %arg8[%c0_4, %c0_5] : memref<8x128xf32, #tpu.memory_space<vmem>>, vector<8x128xf32>
    %cst = arith.constant dense<0.000000e+00> : vector<8x128xf32>
    %8 = tpu.matmul %7, %6, %cst {dimension_numbers = #tpu.dot_dimension_numbers<[1], [1], [0], [0], [0, 0, 1, 0], [], []>} : vector<8x128xf32>, vector<128x128xf32>, vector<8x128xf32> -> vector<8x128xf32>
    %c0_6 = arith.constant 0 : index
    %c0_7 = arith.constant 0 : index
    %9 = vector.load %arg6[%c0_6, %c0_7] : memref<1x128xf32, #tpu.memory_space<vmem>>, vector<1x128xf32>
    %10 = vector.broadcast %9 : vector<1x128xf32> to vector<8x128xf32>
    %11 = arith.addf %8, %10 : vector<8x128xf32>
    %c0_8 = arith.constant 0 : index
    %c0_9 = arith.constant 0 : index
    %12 = vector.load %arg9[%c0_8, %c0_9] : memref<8x1xf32, #tpu.memory_space<vmem>>, vector<8x1xf32>
    %cst_10 = arith.constant dense<0xFF800000> : vector<8xf32>
    %13 = vector.multi_reduction <maximumf>, %11, %cst_10 [1] : vector<8x128xf32> to vector<8xf32>
    %14 = vector.shape_cast %13 : vector<8xf32> to vector<8x1xf32>
    %15 = arith.maximumf %12, %14 : vector<8x1xf32>
    %16 = arith.subf %12, %15 : vector<8x1xf32>
    %17 = math.exp %16 : vector<8x1xf32>
    %c0_11 = arith.constant 0 : index
    %c0_12 = arith.constant 0 : index
    %18 = vector.load %arg10[%c0_11, %c0_12] : memref<8x1xf32, #tpu.memory_space<vmem>>, vector<8x1xf32>
    %19 = arith.mulf %17, %18 : vector<8x1xf32>
    %20 = vector.broadcast %15 : vector<8x1xf32> to vector<8x128xf32>
    %21 = arith.subf %11, %20 : vector<8x128xf32>
    %22 = math.exp %21 : vector<8x128xf32>
    %cst_13 = arith.constant dense<0.000000e+00> : vector<8xf32>
    %23 = vector.multi_reduction <add>, %22, %cst_13 [1] : vector<8x128xf32> to vector<8xf32>
    %24 = vector.shape_cast %23 : vector<8xf32> to vector<8x1xf32>
    %25 = arith.addf %19, %24 : vector<8x1xf32>
    %c0_14 = arith.constant 0 : index
    %c0_15 = arith.constant 0 : index
    %26 = vector.load %arg10[%c0_14, %c0_15] : memref<8x1xf32, #tpu.memory_space<vmem>>, vector<8x1xf32>
    tpu.vector_store %arg10[%c0_14, %c0_15], %25 {strides = array<i32>} : memref<8x1xf32, #tpu.memory_space<vmem>>, vector<8x1xf32>,
    %c0_16 = arith.constant 0 : index
    %c0_17 = arith.constant 0 : index
    %27 = vector.load %arg9[%c0_16, %c0_17] : memref<8x1xf32, #tpu.memory_space<vmem>>, vector<8x1xf32>
    tpu.vector_store %arg9[%c0_16, %c0_17], %15 {strides = array<i32>} : memref<8x1xf32, #tpu.memory_space<vmem>>, vector<8x1xf32>,
    %c0_i32_18 = arith.constant 0 : i32
    %28 = arith.cmpi eq, %arg1, %c0_i32_18 : i32
    %29 = arith.extui %28 : i1 to i32
    %c0_i32_19 = arith.constant 0 : i32
    %30 = arith.cmpi ne, %29, %c0_i32_19 : i32
    scf.if %30 {
      %c0_20 = arith.constant 0 : index
      %c0_21 = arith.constant 0 : index
      %31 = vector.load %arg9[%c0_20, %c0_21] : memref<8x1xf32, #tpu.memory_space<vmem>>, vector<8x1xf32>
      %c0_22 = arith.constant 0 : index
      %c0_23 = arith.constant 0 : index
      %32 = vector.load %arg10[%c0_22, %c0_23] : memref<8x1xf32, #tpu.memory_space<vmem>>, vector<8x1xf32>
      %33 = math.log %32 : vector<8x1xf32>
      %34 = arith.addf %31, %33 : vector<8x1xf32>
      %c0_24 = arith.constant 0 : index
      %c0_25 = arith.constant 0 : index
      %35 = vector.load %arg11[%c0_24, %c0_25] : memref<8x1xf32, #tpu.memory_space<vmem>>, vector<8x1xf32>
      %36 = arith.subf %34, %35 : vector<8x1xf32>
      %c0_26 = arith.constant 0 : index
      %c0_27 = arith.constant 0 : index
      %37 = vector.load %arg7[%c0_26, %c0_27] : memref<8x1xf32, #tpu.memory_space<vmem>>, vector<8x1xf32>
      tpu.vector_store %arg7[%c0_26, %c0_27], %36 {strides = array<i32>} : memref<8x1xf32, #tpu.memory_space<vmem>>, vector<8x1xf32>,
    } else {
    }
    return
  }
  func.func @transform_0(%arg0: i32, %arg1: i32) -> (i32, i32) {
    %c0_i32 = arith.constant 0 : i32
    %c0_i32_0 = arith.constant 0 : i32
    return %arg0, %c0_i32 : i32, i32
  }
  func.func @transform_1(%arg0: i32, %arg1: i32) -> (i32, i32) {
    %c0_i32 = arith.constant 0 : i32
    %c0_i32_0 = arith.constant 0 : i32
    return %arg0, %c0_i32 : i32, i32
  }
  func.func @transform_2(%arg0: i32, %arg1: i32) -> (i32, i32) {
    %c0_i32 = arith.constant 0 : i32
    %c0_i32_0 = arith.constant 0 : i32
    return %arg1, %c0_i32 : i32, i32
  }
  func.func @transform_3(%arg0: i32, %arg1: i32) -> (i32, i32) {
    %c0_i32 = arith.constant 0 : i32
    %c0_i32_0 = arith.constant 0 : i32
    return %arg1, %c0_i32 : i32, i32
  }
  func.func @transform_4(%arg0: i32, %arg1: i32) -> (i32, i32) {
    %c0_i32 = arith.constant 0 : i32
    %c0_i32_0 = arith.constant 0 : i32
    return %c0_i32, %arg1 : i32, i32
  }
  func.func @transform_5(%arg0: i32, %arg1: i32) -> (i32, i32) {
    %c0_i32 = arith.constant 0 : i32
    %c0_i32_0 = arith.constant 0 : i32
    return %arg0, %c0_i32 : i32, i32
  }
}

</mosaic_0001>

<llo_original>
// kernel: tpu_custom_call.1
$region0: #{tpu_custom_call.1}
  #allocation0 [shape = 'u32[]', space=smem, size = 0x4, offset = 0x4, fixed_abs, tag = 'smem constant byte address 0x4 - core index']
  #allocation1 [shape = 'u32[144,128]{1,0:T(1,128)}', space=vmem, size = 0x12000, scoped, tag = 'internal scratch']
  #allocation2 [shape = 'f32[8,128]{1,0:T(8,128)}', space=vmem, size = 0x1000, scoped, tag = 'scratch operand']
  #allocation3 [shape = 'f32[8,1]{1,0:T(8,128)}', space=vmem, size = 0x1000, scoped, tag = 'scratch operand']
  #allocation4 [shape = 'f32[8,1]{1,0:T(8,128)}', space=vmem, size = 0x1000, scoped, tag = 'scratch operand']
  #allocation5 [shape = 'f32[8,1]{1,0:T(8,128)}', space=vmem, size = 0x1000, scoped, tag = 'scratch operand']
  %s0 = inlined_call_operand.vmem [shape: f32[8,128], index: 0, kind: input, shape index: {}]
  %s1 = inlined_call_operand.hbm [shape: f32[8,128], index: 1, kind: input, shape index: {}]
  %s2 = inlined_call_operand.vmem [shape: f32[128,128], index: 2, kind: input, shape index: {}]
  %s3 = inlined_call_operand.vmem [shape: f32[128,1], index: 3, kind: input, shape index: {}]
  %s4 = inlined_call_operand.vmem [shape: f32[1,128], index: 4, kind: input, shape index: {}]
  %s5 = inlined_call_operand.vmem [shape: f32[8,1], index: 5, kind: output, shape index: {}]
  %s6 = sld [smem:[#allocation0]]
  $region42: #{tpu_custom_call.1} parent=0
    _
  %s8 = ssub.s32 1, %s6
  %s9 = scalar_select 0, %s8, %s6
  $region1: #{tpu_custom_call.1} parent=0
    #allocation6 [shape = 'u8[4096]{0}', space=vmem, size = 0x1000, scoped, tag = 'input window, operand 1, single buffered']
    #allocation7 [shape = 's32[1]{0}', space=sflag, size = 0x4, scoped, tag = 'scoped memory for tpu_custom_call.1']
    %10 = vsyncpa [#allocation7], 0
    // Predicated region
    $region2: #{tpu_custom_call.1} parent=1 // pred_check
      _
    $region3: #{tpu_custom_call.1} parent=1 // pred_check_branch
      %12 = sbr.rel (0) target = $region5
    $region4: #{tpu_custom_call.1} parent=1 // pred_region
      _
    $region5: #{tpu_custom_call.1} parent=1 // pred_fallthru
      _
    // Predicated region
    $region6: #{tpu_custom_call.1} parent=1 // pred_check
      _
    $region7: #{tpu_custom_call.1} parent=1 // pred_check_branch
      %14 = sbr.rel (0) target = $region9
    $region8: #{tpu_custom_call.1} parent=1 // pred_region
      %s16 = ssub.s32 128, 128
      %17 = vsyncadd [#allocation7], %s16
      %s19 = sshll.u32 [#allocation6], 4
      %s20 = int_to_ptr.vmem [resolvable:$true] %s19
      %22 = dma.hbm_to_vmem [thread:$0]  %s1, 128, %s20, [#allocation7]
    $region9: #{tpu_custom_call.1} parent=1 // pred_fallthru
      _
    // Predicated region
    $region10: #{tpu_custom_call.1} parent=1 // pred_check
      _
    $region11: #{tpu_custom_call.1} parent=1 // pred_check_branch
      %24 = sbr.rel (0) target = $region13
    $region12: #{tpu_custom_call.1} parent=1 // pred_region
      _
    $region13: #{tpu_custom_call.1} parent=1 // pred_fallthru
      _
    // Predicated region
    $region14: #{tpu_custom_call.1} parent=1 // pred_check
      _
    $region15: #{tpu_custom_call.1} parent=1 // pred_check_branch
      %26 = sbr.rel (0) target = $region17
    $region16: #{tpu_custom_call.1} parent=1 // pred_region
      _
    $region17: #{tpu_custom_call.1} parent=1 // pred_fallthru
      _
    // Predicated region
    $region18: #{tpu_custom_call.1} parent=1 // pred_check
      _
    $region19: #{tpu_custom_call.1} parent=1 // pred_check_branch
      %28 = sbr.rel (0) target = $region21
    $region20: #{tpu_custom_call.1} parent=1 // pred_region
      _
    $region21: #{tpu_custom_call.1} parent=1 // pred_fallthru
      _
    // Predicated region
    $region22: #{tpu_custom_call.1} parent=1 // pred_check
      _
    $region23: #{tpu_custom_call.1} parent=1 // pred_check_branch
      %30 = sbr.rel (0) target = $region25
    $region24: #{tpu_custom_call.1} parent=1 // pred_region
      %31 = dma.done [#allocation7], 128
    $region25: #{tpu_custom_call.1} parent=1 // pred_fallthru
      _
    %p32 = scmp.eq.s32.totalorder 0, 0
    // Predicated region
    $region26: #{tpu_custom_call.1} parent=1 // pred_check
      %p33 = pneg %p32
    $region27: #{tpu_custom_call.1} parent=1 // pred_check_branch
      %35 = sbr.rel (%p33) target = $region29
    $region28: #{tpu_custom_call.1} parent=1 // pred_region
      %v36 = vld [vmem:[%s0] sm:$0xff]
      %v37 = vld [vmem:[#allocation6] sm:$0xff]
      %v38 = vmul.f32 %v36, %v36
      %39 = vadd.xlane.f32.xlu0 %v38
      %v40 = vpop.xlane.xlu0 %39
      %v41 = vmax.f32 %v40, 1e-24
      %v42 = vrsqrt.pop %v41
      %v43 = vmul.f32 %v42, 10.0
      %v44 = vmul.f32 %v37, %v37
      %45 = vadd.xlane.f32.xlu0 %v44
      %v46 = vpop.xlane.xlu0 %45
      %v47 = vmax.f32 %v46, 1e-24
      %v48 = vrsqrt.pop %v47
      %v49 = vmul.f32 %v36, %v43
      %50 = vst [vmem:[#allocation2] sm:$0xff] %v49
      %v51 = vmul.f32 %v37, %v48
      %v52 = vmul.f32 %v49, %v51
      %53 = vadd.xlane.f32.xlu0 %v52
      %v54 = vpop.xlane.xlu0 %53
      %vm55 = vcmask 7168
      %56 = vst.msk [vmem:[#allocation5] sm:$0xff] %vm55, %v54
      %57 = vst.msk [vmem:[#allocation3] sm:$0xff] %vm55, %v54
      %58 = vst.msk [vmem:[#allocation4] sm:$0xff] %vm55, 1.0
    $region29: #{tpu_custom_call.1} parent=1 // pred_fallthru
      _
    %v59 = vld [vmem:[%s2] sm:$0xff]
    %v60 = vld [vmem:[%s2 + $0x8] sm:$0xff]
    %v61 = vld [vmem:[%s2 + $0x10] sm:$0xff]
    %v62 = vld [vmem:[%s2 + $0x18] sm:$0xff]
    %v63 = vld [vmem:[%s2 + $0x20] sm:$0xff]
    %v64 = vld [vmem:[%s2 + $0x28] sm:$0xff]
    %v65 = vld [vmem:[%s2 + $0x30] sm:$0xff]
    %v66 = vld [vmem:[%s2 + $0x38] sm:$0xff]
    %v67 = vld [vmem:[%s2 + $0x40] sm:$0xff]
    %v68 = vld [vmem:[%s2 + $0x48] sm:$0xff]
    %v69 = vld [vmem:[%s2 + $0x50] sm:$0xff]
    %v70 = vld [vmem:[%s2 + $0x58] sm:$0xff]
    %v71 = vld [vmem:[%s2 + $0x60] sm:$0xff]
    %v72 = vld [vmem:[%s2 + $0x68] sm:$0xff]
    %v73 = vld [vmem:[%s2 + $0x70] sm:$0xff]
    %v74 = vld [vmem:[%s2 + $0x78] sm:$0xff]
    %v75 = vld [vmem:[%s3] sm:$0xff]
    %v76 = vld [vmem:[%s3 + $0x8] sm:$0xff]
    %v77 = vld [vmem:[%s3 + $0x10] sm:$0xff]
    %v78 = vld [vmem:[%s3 + $0x18] sm:$0xff]
    %v79 = vld [vmem:[%s3 + $0x20] sm:$0xff]
    %v80 = vld [vmem:[%s3 + $0x28] sm:$0xff]
    %v81 = vld [vmem:[%s3 + $0x30] sm:$0xff]
    %v82 = vld [vmem:[%s3 + $0x38] sm:$0xff]
    %v83 = vld [vmem:[%s3 + $0x40] sm:$0xff]
    %v84 = vld [vmem:[%s3 + $0x48] sm:$0xff]
    %v85 = vld [vmem:[%s3 + $0x50] sm:$0xff]
    %v86 = vld [vmem:[%s3 + $0x58] sm:$0xff]
    %v87 = vld [vmem:[%s3 + $0x60] sm:$0xff]
    %v88 = vld [vmem:[%s3 + $0x68] sm:$0xff]
    %v89 = vld [vmem:[%s3 + $0x70] sm:$0xff]
    %v90 = vld [vmem:[%s3 + $0x78] sm:$0xff]
    %92 = vset.pattern.permute.xlu0 0
    %93 = vperm.xlu0 %92, %v75
    %v94 = vpop.permute.xlu0 %93
    %97 = vset.pattern.permute.xlu0 0
    %98 = vperm.xlu0 %97, %v76
    %v99 = vpop.permute.xlu0 %98
    %102 = vset.pattern.permute.xlu0 0
    %103 = vperm.xlu0 %102, %v77
    %v104 = vpop.permute.xlu0 %103
    %107 = vset.pattern.permute.xlu0 0
    %108 = vperm.xlu0 %107, %v78
    %v109 = vpop.permute.xlu0 %108
    %112 = vset.pattern.permute.xlu0 0
    %113 = vperm.xlu0 %112, %v79
    %v114 = vpop.permute.xlu0 %113
    %117 = vset.pattern.permute.xlu0 0
    %118 = vperm.xlu0 %117, %v80
    %v119 = vpop.permute.xlu0 %118
    %122 = vset.pattern.permute.xlu0 0
    %123 = vperm.xlu0 %122, %v81
    %v124 = vpop.permute.xlu0 %123
    %127 = vset.pattern.permute.xlu0 0
    %128 = vperm.xlu0 %127, %v82
    %v129 = vpop.permute.xlu0 %128
    %132 = vset.pattern.permute.xlu0 0
    %133 = vperm.xlu0 %132, %v83
    %v134 = vpop.permute.xlu0 %133
    %137 = vset.pattern.permute.xlu0 0
    %138 = vperm.xlu0 %137, %v84
    %v139 = vpop.permute.xlu0 %138
    %142 = vset.pattern.permute.xlu0 0
    %143 = vperm.xlu0 %142, %v85
    %v144 = vpop.permute.xlu0 %143
    %147 = vset.pattern.permute.xlu0 0
    %148 = vperm.xlu0 %147, %v86
    %v149 = vpop.permute.xlu0 %148
    %152 = vset.pattern.permute.xlu0 0
    %153 = vperm.xlu0 %152, %v87
    %v154 = vpop.permute.xlu0 %153
    %157 = vset.pattern.permute.xlu0 0
    %158 = vperm.xlu0 %157, %v88
    %v159 = vpop.permute.xlu0 %158
    %162 = vset.pattern.permute.xlu0 0
    %163 = vperm.xlu0 %162, %v89
    %v164 = vpop.permute.xlu0 %163
    %167 = vset.pattern.permute.xlu0 0
    %168 = vperm.xlu0 %167, %v90
    %v169 = vpop.permute.xlu0 %168
    %v171 = vmul.f32 %v59, %v94
    %v172 = vmul.f32 %v60, %v99
    %v173 = vmul.f32 %v61, %v104
    %v174 = vmul.f32 %v62, %v109
    %v175 = vmul.f32 %v63, %v114
    %v176 = vmul.f32 %v64, %v119
    %v177 = vmul.f32 %v65, %v124
    %v178 = vmul.f32 %v66, %v129
    %v179 = vmul.f32 %v67, %v134
    %v180 = vmul.f32 %v68, %v139
    %v181 = vmul.f32 %v69, %v144
    %v182 = vmul.f32 %v70, %v149
    %v183 = vmul.f32 %v71, %v154
    %v184 = vmul.f32 %v72, %v159
    %v185 = vmul.f32 %v73, %v164
    %v186 = vmul.f32 %v74, %v169
    %v187 = vld [vmem:[#allocation2] sm:$0xff]
    %v188 = vld [vmem:[%s4] sm:$0x1]
    %v190 = vlaneseq
    %v191 = vshrl.u32 %v190, 7
    %v192 = vsub.s32 0, %v191
    %v193 = vrot.slane %v188, %v192
    %195 = vmatprep.subr.mxu0 0.0
    %196 = vmatpush1.xpose.msra.mxu0 %v171
    %197 = vmatprep.subr.mxu0 0.0
    %198 = vmatpush1.xpose.msra.mxu0 %v172
    %199 = vmatprep.subr.mxu0 0.0
    %200 = vmatpush1.xpose.msra.mxu0 %v173
    %201 = vmatprep.subr.mxu0 0.0
    %202 = vmatpush1.xpose.msra.mxu0 %v174
    %203 = vmatprep.subr.mxu0 0.0
    %204 = vmatpush1.xpose.msra.mxu0 %v175
    %205 = vmatprep.subr.mxu0 0.0
    %206 = vmatpush1.xpose.msra.mxu0 %v176
    %207 = vmatprep.subr.mxu0 0.0
    %208 = vmatpush1.xpose.msra.mxu0 %v177
    %209 = vmatprep.subr.mxu0 0.0
    %210 = vmatpush1.xpose.msra.mxu0 %v178
    %211 = vmatprep.subr.mxu0 0.0
    %212 = vmatpush1.xpose.msra.mxu0 %v179
    %213 = vmatprep.subr.mxu0 0.0
    %214 = vmatpush1.xpose.msra.mxu0 %v180
    %215 = vmatprep.subr.mxu0 0.0
    %216 = vmatpush1.xpose.msra.mxu0 %v181
    %217 = vmatprep.subr.mxu0 0.0
    %218 = vmatpush1.xpose.msra.mxu0 %v182
    %219 = vmatprep.subr.mxu0 0.0
    %220 = vmatpush1.xpose.msra.mxu0 %v183
    %221 = vmatprep.subr.mxu0 0.0
    %222 = vmatpush1.xpose.msra.mxu0 %v184
    %223 = vmatprep.subr.mxu0 0.0
    %224 = vmatpush1.xpose.msra.mxu0 %v185
    %225 = vmatprep.subr.mxu0 0.0
    %226 = vmatpush1.xpose.msra.mxu0 %v186
    %227 = vmatprep.subr.mxu0 0.0
    %228 = vmatpush1.xpose.msra.mxu0 0.0
    %229 = vmatprep.subr.mxu0 0.0
    %230 = vmatpush1.xpose.msra.mxu0 0.0
    %231 = vmatprep.subr.mxu0 0.0
    %232 = vmatpush1.xpose.msra.mxu0 0.0
    %233 = vmatprep.subr.mxu0 0.0
    %234 = vmatpush1.xpose.msra.mxu0 0.0
    %235 = vmatprep.subr.mxu0 0.0
    %236 = vmatpush1.xpose.msra.mxu0 0.0
    %237 = vmatprep.subr.mxu0 0.0
    %238 = vmatpush1.xpose.msra.mxu0 0.0
    %239 = vmatprep.subr.mxu0 0.0
    %240 = vmatpush1.xpose.msra.mxu0 0.0
    %241 = vmatprep.subr.mxu0 0.0
    %242 = vmatpush1.xpose.msra.mxu0 0.0
    %243 = vmatprep.subr.mxu0 0.0
    %244 = vmatpush1.xpose.msra.mxu0 0.0
    %245 = vmatprep.subr.mxu0 0.0
    %246 = vmatpush1.xpose.msra.mxu0 0.0
    %247 = vmatprep.subr.mxu0 0.0
    %248 = vmatpush1.xpose.msra.mxu0 0.0
    %249 = vmatprep.subr.mxu0 0.0
    %250 = vmatpush1.xpose.msra.mxu0 0.0
    %251 = vmatprep.subr.mxu0 0.0
    %252 = vmatpush1.xpose.msra.mxu0 0.0
    %253 = vmatprep.subr.mxu0 0.0
    %254 = vmatpush1.xpose.msra.mxu0 0.0
    %255 = vmatprep.subr.mxu0 0.0
    %256 = vmatpush1.xpose.msra.mxu0 0.0
    %257 = vmatprep.subr.mxu0 0.0
    %258 = vmatpush1.xpose.msra.mxu0 0.0
    %259 = vmatprep.mubr.f32.mxu0 0.0
    %260 = vmatmul.mubr.f32.gmra.mrb[0].mxu0 %v187
    %v261 = vpop.f32.mrb[0].mxu0
    %v262 = vadd.f32 %v193, %v261
    %v263 = vpop.f32.mrb[0].mxu0
    %264 = vdwg.mxu0
    %v265 = vld [vmem:[#allocation3] sm:$0xff]
    %266 = vmax.xlane.f32.xlu0 %v262
    %v267 = vpop.xlane.xlu0 %266
    %v268 = vmax.f32 %v265, %v267
    %v269 = vsub.f32 %v265, %v268
    %v270 = vmul.f32 %v269, 1.442695
    %v271 = vpow.pop %v270
    %v272 = vld [vmem:[#allocation4] sm:$0xff]
    %v273 = vmul.f32 %v271, %v272
    %275 = vset.pattern.permute.xlu0 0
    %276 = vperm.xlu0 %275, %v268
    %v277 = vpop.permute.xlu0 %276
    %v279 = vsub.f32 %v262, %v277
    %v280 = vmul.f32 %v279, 1.442695
    %v281 = vpow.pop %v280
    %282 = vadd.xlane.f32.xlu0 %v281
    %v283 = vpop.xlane.xlu0 %282
    %v284 = vadd.f32 %v273, %v283
    %vm285 = vcmask 7168
    %286 = vst.msk [vmem:[#allocation4] sm:$0xff] %vm285, %v284
    %287 = vst.msk [vmem:[#allocation3] sm:$0xff] %vm285, %v268
    // Predicated region
    $region30: #{tpu_custom_call.1} parent=1 // pred_check
      %p288 = pneg %p32
    $region31: #{tpu_custom_call.1} parent=1 // pred_check_branch
      %290 = sbr.rel (%p288) target = $region33
    $region32: #{tpu_custom_call.1} parent=1 // pred_region
      %v291 = vld [vmem:[#allocation3] sm:$0xff]
      %v292 = vld [vmem:[#allocation4] sm:$0xff]
      %v293 = vlog2.pop %v292
      %v294 = vmul.f32 %v293, 0.6931472
      %v295 = vadd.f32 %v291, %v294
      %v296 = vld [vmem:[#allocation5] sm:$0xff]
      %v297 = vsub.f32 %v295, %v296
      %298 = vst.msk [vmem:[%s5] sm:$0xff] %vm285, %v297
    $region33: #{tpu_custom_call.1} parent=1 // pred_fallthru
      _
    // Predicated region
    $region34: #{tpu_custom_call.1} parent=1 // pred_check
      _
    $region35: #{tpu_custom_call.1} parent=1 // pred_check_branch
      %300 = sbr.rel (0) target = $region37
    $region36: #{tpu_custom_call.1} parent=1 // pred_region
      _
    $region37: #{tpu_custom_call.1} parent=1 // pred_fallthru
      _
    // Predicated region
    $region38: #{tpu_custom_call.1} parent=1 // pred_check
      _
    $region39: #{tpu_custom_call.1} parent=1 // pred_check_branch
      %302 = sbr.rel (0) target = $region41
    $region40: #{tpu_custom_call.1} parent=1 // pred_region
      _
    $region41: #{tpu_custom_call.1} parent=1 // pred_fallthru
      _
    %303 = vsyncpa [#allocation7], 1

</llo_original>
